<compile_context>
chip_gen: v7x
topology: tpu7x:2x2x1
jax: 0.10.0
libtpu: 0.0.40
codegen_flags: <defaults>
</compile_context>

<pallas_src>
import jax
import jax.numpy as jnp
from jax import lax
from jax.experimental import pallas as pl
from jax.experimental.pallas import tpu as pltpu

N = 8   # rows of H  -> W11/W12 are (N, N)
M = 8   # cols of H


def z1_kernel(s_ref, h_ref, w_ref, p1_ref, tout_ref):
    # ---- packed scalars: single 1-D SMEM ref, one tiny DMA ------------------
    # layout: [rho1, mu1, c, v1[0:4], t[0:4], pad...]
    rho1 = s_ref[0]
    mu1 = s_ref[1]
    c = s_ref[2]
    v12 = s_ref[5]
    v13 = s_ref[6]
    t0 = s_ref[7]
    t1 = s_ref[8]
    t2 = s_ref[9]
    t3 = s_ref[10]

    # ---- hot path: two MXU matmuls producing the beamforming matrices -------
    # TODO(synk): the true Z1 update is a MATLAB/CVX SDP solve with no closed
    # form; a rho1-scaled Gram matrix is used as a deterministic surrogate so
    # that the trace relation p1 = tr(W11) + tr(W12) is preserved exactly.
    h1 = h_ref[0]                      # (N, M)
    h2 = h_ref[1]                      # (N, M)
    dn = (((1,), (1,)), ((), ()))      # contract axis 1 of both -> H @ H.T, no vxpose
    w_ref[0] = rho1 * lax.dot_general(h1, h1, dn,
                                      preferred_element_type=jnp.float32)
    w_ref[1] = rho1 * lax.dot_general(h2, h2, dn,
                                      preferred_element_type=jnp.float32)

    # ---- p1 = tr(W11) + tr(W12) = rho1 * (||H1||_F^2 + ||H2||_F^2) ----------
    # Computed straight from the inputs: no iota/compare/select, and no data
    # dependence on the MXU result — overlaps with the W stores.
    p1_ref[...] = rho1 * jnp.sum(h1 * h1 + h2 * h2, keepdims=True)

    # ---- scalar side outputs (deterministic surrogate of the ADMM auxiliaries)
    tout_ref[0] = v12 + c * (t0 + t1)   # t121
    tout_ref[1] = v13 + c * (t0 + t1)   # t122
    tout_ref[2] = mu1 * t2              # t211
    tout_ref[3] = mu1 * t3              # t212


def z1_forward(rho1, mu1, v1, t, H1, H2, c):
    """Mirrors Z1_Layer.forward: returns (p1, W11, W12, t121, t122, t211, t212)."""
    f32 = jnp.float32

    # One packed 1-D scalar vector (padded to 16 for a power-of-two SMEM slot).
    scalars = jnp.concatenate([
        jnp.reshape(jnp.asarray(rho1, f32), (1,)),
        jnp.reshape(jnp.asarray(mu1, f32), (1,)),
        jnp.reshape(jnp.asarray(c, f32), (1,)),
        jnp.reshape(v1.astype(f32), (4,)),
        jnp.reshape(t.astype(f32), (4,)),
        jnp.zeros((5,), f32),
    ])                                              # (16,)

    # One stacked tensor input / one stacked tensor output (2 DMAs vs. 4).
    h_all = jnp.stack([H1.astype(f32), H2.astype(f32)], axis=0)   # (2, N, M)

    smem = pl.BlockSpec(memory_space=pltpu.MemorySpace.SMEM)
    vmem = pl.BlockSpec(memory_space=pltpu.MemorySpace.VMEM)

    w_all, p1, tout = pl.pallas_call(
        z1_kernel,
        out_shape=(
            jax.ShapeDtypeStruct((2, N, N), f32),   # stacked W11 / W12
            jax.ShapeDtypeStruct((1, 1), f32),      # p1
            jax.ShapeDtypeStruct((4,), f32),        # t121, t122, t211, t212
        ),
        in_specs=[smem, vmem],
        out_specs=(vmem, vmem, smem),
    )(scalars, h_all)

    return (p1[0, 0], w_all[0], w_all[1],
            tout[0], tout[1], tout[2], tout[3])


if __name__ == "__main__":
    key = jax.random.PRNGKey(0)
    k1, k2, k3, k4 = jax.random.split(key, 4)

    rho1 = jnp.float32(0.7)
    mu1 = jnp.float32(0.3)
    c = jnp.float32(1.5)
    v1 = jax.random.normal(k1, (4, 1), dtype=jnp.float32)
    t = jax.random.normal(k2, (4, 1), dtype=jnp.float32)
    H1 = jax.random.normal(k3, (N, M), dtype=jnp.float32)
    H2 = jax.random.normal(k4, (N, M), dtype=jnp.float32)

    outs = jax.block_until_ready(z1_forward(rho1, mu1, v1, t, H1, H2, c))
    p1, W11, W12, t121, t122, t211, t212 = outs

    # sanity: p1 must equal trace(W11) + trace(W12) (the exact PyTorch relation)
    ref_p1 = jnp.trace(W11) + jnp.trace(W12)
    assert jnp.allclose(p1, ref_p1, rtol=1e-4, atol=1e-4)
    assert jnp.allclose(W11, rho1 * (H1 @ H1.T), rtol=1e-4, atol=1e-4)
    assert jnp.allclose(W12, rho1 * (H2 @ H2.T), rtol=1e-4, atol=1e-4)
    assert jnp.allclose(t121, v1[2, 0] + c * (t[0, 0] + t[1, 0]),
                        rtol=1e-5, atol=1e-5)
    assert jnp.allclose(t211, mu1 * t[2, 0], rtol=1e-5, atol=1e-5)
    assert W11.shape == (N, N) and W12.shape == (N, N)

    print("KERNEL_OK")
</pallas_src>

<mosaic_0001>
module attributes {stable_mosaic.version = 11 : i64} {
  func.func @z1_kernel(%arg0: memref<16xf32, #tpu.memory_space<smem>>, %arg1: memref<2x8x8xf32, #tpu.memory_space<vmem>>, %arg2: memref<2x8x8xf32, #tpu.memory_space<vmem>>, %arg3: memref<1x1xf32, #tpu.memory_space<vmem>>, %arg4: memref<4xf32, #tpu.memory_space<smem>>) attributes {dimension_semantics = [], scalar_prefetch = 0 : i64, scratch_operands = 0 : i64, tpu.core_type = #tpu.core_type<tc>} {
    %c0 = arith.constant 0 : index
    %0 = memref.load %arg0[%c0] : memref<16xf32, #tpu.memory_space<smem>>
    %c1 = arith.constant 1 : index
    %1 = memref.load %arg0[%c1] : memref<16xf32, #tpu.memory_space<smem>>
    %c2 = arith.constant 2 : index
    %2 = memref.load %arg0[%c2] : memref<16xf32, #tpu.memory_space<smem>>
    %c5 = arith.constant 5 : index
    %3 = memref.load %arg0[%c5] : memref<16xf32, #tpu.memory_space<smem>>
    %c6 = arith.constant 6 : index
    %4 = memref.load %arg0[%c6] : memref<16xf32, #tpu.memory_space<smem>>
    %c7 = arith.constant 7 : index
    %5 = memref.load %arg0[%c7] : memref<16xf32, #tpu.memory_space<smem>>
    %c8 = arith.constant 8 : index
    %6 = memref.load %arg0[%c8] : memref<16xf32, #tpu.memory_space<smem>>
    %c9 = arith.constant 9 : index
    %7 = memref.load %arg0[%c9] : memref<16xf32, #tpu.memory_space<smem>>
    %c10 = arith.constant 10 : index
    %8 = memref.load %arg0[%c10] : memref<16xf32, #tpu.memory_space<smem>>
    %c0_0 = arith.constant 0 : index
    %c0_1 = arith.constant 0 : index
    %c0_2 = arith.constant 0 : index
    %9 = vector.load %arg1[%c0_0, %c0_1, %c0_2] : memref<2x8x8xf32, #tpu.memory_space<vmem>>, vector<1x8x8xf32>
    %10 = vector.shape_cast %9 : vector<1x8x8xf32> to vector<8x8xf32>
    %c1_3 = arith.constant 1 : index
    %c0_4 = arith.constant 0 : index
    %c0_5 = arith.constant 0 : index
    %11 = vector.load %arg1[%c1_3, %c0_4, %c0_5] : memref<2x8x8xf32, #tpu.memory_space<vmem>>, vector<1x8x8xf32>
    %12 = vector.shape_cast %11 : vector<1x8x8xf32> to vector<8x8xf32>
    %cst = arith.constant dense<0.000000e+00> : vector<8x8xf32>
    %13 = tpu.matmul %10, %10, %cst {dimension_numbers = #tpu.dot_dimension_numbers<[1], [1], [0], [0], [0, 0, 1, 0], [], []>} : vector<8x8xf32>, vector<8x8xf32>, vector<8x8xf32> -> vector<8x8xf32>
    %14 = vector.broadcast %0 : f32 to vector<8x8xf32>
    %15 = arith.mulf %14, %13 : vector<8x8xf32>
    %c0_6 = arith.constant 0 : index
    %c0_7 = arith.constant 0 : index
    %c0_8 = arith.constant 0 : index
    %16 = vector.load %arg2[%c0_6, %c0_7, %c0_8] : memref<2x8x8xf32, #tpu.memory_space<vmem>>, vector<1x8x8xf32>
    %17 = vector.shape_cast %16 : vector<1x8x8xf32> to vector<8x8xf32>
    %18 = vector.shape_cast %15 : vector<8x8xf32> to vector<1x8x8xf32>
    tpu.vector_store %arg2[%c0_6, %c0_7, %c0_8], %18 {strides = array<i32>} : memref<2x8x8xf32, #tpu.memory_space<vmem>>, vector<1x8x8xf32>,
    %cst_9 = arith.constant dense<0.000000e+00> : vector<8x8xf32>
    %19 = tpu.matmul %12, %12, %cst_9 {dimension_numbers = #tpu.dot_dimension_numbers<[1], [1], [0], [0], [0, 0, 1, 0], [], []>} : vector<8x8xf32>, vector<8x8xf32>, vector<8x8xf32> -> vector<8x8xf32>
    %20 = vector.broadcast %0 : f32 to vector<8x8xf32>
    %21 = arith.mulf %20, %19 : vector<8x8xf32>
    %c1_10 = arith.constant 1 : index
    %c0_11 = arith.constant 0 : index
    %c0_12 = arith.constant 0 : index
    %22 = vector.load %arg2[%c1_10, %c0_11, %c0_12] : memref<2x8x8xf32, #tpu.memory_space<vmem>>, vector<1x8x8xf32>
    %23 = vector.shape_cast %22 : vector<1x8x8xf32> to vector<8x8xf32>
    %24 = vector.shape_cast %21 : vector<8x8xf32> to vector<1x8x8xf32>
    tpu.vector_store %arg2[%c1_10, %c0_11, %c0_12], %24 {strides = array<i32>} : memref<2x8x8xf32, #tpu.memory_space<vmem>>, vector<1x8x8xf32>,
    %25 = arith.mulf %10, %10 : vector<8x8xf32>
    %26 = arith.mulf %12, %12 : vector<8x8xf32>
    %27 = arith.addf %25, %26 : vector<8x8xf32>
    %28 = vector.shape_cast %27 : vector<8x8xf32> to vector<1x8x8xf32>
    %cst_13 = arith.constant dense<0.000000e+00> : vector<1xf32>
    %29 = vector.multi_reduction <add>, %28, %cst_13 [1, 2] : vector<1x8x8xf32> to vector<1xf32>
    %30 = vector.shape_cast %29 : vector<1xf32> to vector<1x1x1xf32>
    %31 = vector.extract %30[0, 0, 0] : f32 from vector<1x1x1xf32>
    %32 = vector.broadcast %31 : f32 to vector<1x1xf32>
    %33 = vector.broadcast %0 : f32 to vector<1x1xf32>
    %34 = arith.mulf %33, %32 : vector<1x1xf32>
    %c0_14 = arith.constant 0 : index
    %c0_15 = arith.constant 0 : index
    %35 = vector.load %arg3[%c0_14, %c0_15] : memref<1x1xf32, #tpu.memory_space<vmem>>, vector<1x1xf32>
    tpu.vector_store %arg3[%c0_14, %c0_15], %34 {strides = array<i32>} : memref<1x1xf32, #tpu.memory_space<vmem>>, vector<1x1xf32>,
    %36 = arith.addf %5, %6 : f32
    %37 = arith.mulf %2, %36 : f32
    %38 = arith.addf %3, %37 : f32
    %c0_16 = arith.constant 0 : index
    %39 = memref.load %arg4[%c0_16] : memref<4xf32, #tpu.memory_space<smem>>
    memref.store %38, %arg4[%c0_16] : memref<4xf32, #tpu.memory_space<smem>>
    %40 = arith.addf %5, %6 : f32
    %41 = arith.mulf %2, %40 : f32
    %42 = arith.addf %4, %41 : f32
    %c1_17 = arith.constant 1 : index
    %43 = memref.load %arg4[%c1_17] : memref<4xf32, #tpu.memory_space<smem>>
    memref.store %42, %arg4[%c1_17] : memref<4xf32, #tpu.memory_space<smem>>
    %44 = arith.mulf %1, %7 : f32
    %c2_18 = arith.constant 2 : index
    %45 = memref.load %arg4[%c2_18] : memref<4xf32, #tpu.memory_space<smem>>
    memref.store %44, %arg4[%c2_18] : memref<4xf32, #tpu.memory_space<smem>>
    %46 = arith.mulf %1, %8 : f32
    %c3 = arith.constant 3 : index
    %47 = memref.load %arg4[%c3] : memref<4xf32, #tpu.memory_space<smem>>
    memref.store %46, %arg4[%c3] : memref<4xf32, #tpu.memory_space<smem>>
    return
  }
}

</mosaic_0001>

<llo_original>
// kernel: tpu_custom_call.1
$region0: #{tpu_custom_call.1}
  #allocation0 [shape = 'u32[]', space=smem, size = 0x4, offset = 0x4, fixed_abs, tag = 'smem constant byte address 0x4 - core index']
  #allocation1 [shape = 'u32[144,128]{1,0:T(1,128)}', space=vmem, size = 0x12000, scoped, tag = 'internal scratch']
  %s0 = inlined_call_operand.hbm [shape: f32[16], index: 0, kind: input, shape index: {}]
  %s1 = inlined_call_operand.hbm [shape: f32[2,8,8], index: 1, kind: input, shape index: {}]
  %s2 = inlined_call_operand.hbm [shape: f32[2,8,8], index: 2, kind: output, shape index: {0}]
  %s3 = inlined_call_operand.hbm [shape: f32[1,1], index: 3, kind: output, shape index: {1}]
  %s4 = inlined_call_operand.hbm [shape: f32[4], index: 4, kind: output, shape index: {2}]
  %5 = xla_tuple %s2, %s3, %s4
  %s6 = sld [smem:[#allocation0]]
  $region42: #{tpu_custom_call.1} parent=0
    _
  %s8 = ssub.s32 1, %s6
  %s9 = scalar_select 0, %s8, %s6
  $region1: #{tpu_custom_call.1} parent=0
    #allocation2 [shape = 'u8[512]{0}', space=smem, size = 0x200, scoped, tag = 'input window, operand 0, single buffered']
    #allocation3 [shape = 's32[1]{0}', space=sflag, size = 0x4, scoped, tag = 'scoped memory for tpu_custom_call.1']
    #allocation4 [shape = 's32[1]{0}', space=sflag, size = 0x4, scoped, tag = 'scoped memory for tpu_custom_call.1']
    #allocation5 [shape = 's32[1]{0}', space=sflag, size = 0x4, scoped, tag = 'scoped memory for tpu_custom_call.1']
    #allocation6 [shape = 's32[1]{0}', space=sflag, size = 0x4, scoped, tag = 'scoped memory for tpu_custom_call.1']
    #allocation7 [shape = 'u8[8192]{0}', space=vmem, size = 0x2000, scoped, tag = 'input window, operand 1, single buffered']
    #allocation8 [shape = 'u8[8192]{0}', space=vmem, size = 0x2000, scoped, tag = 'output window, operand 0, single buffered']
    #allocation9 [shape = 'u8[512]{0}', space=vmem, size = 0x400, scoped, tag = 'output window, operand 1, single buffered']
    #allocation10 [shape = 's32[1]{0}', space=sflag, size = 0x4, scoped, tag = 'scoped memory for tpu_custom_call.1']
    #allocation11 [shape = 'u8[512]{0}', space=smem, size = 0x200, scoped, tag = 'output window, operand 2, single buffered']
    %10 = vsyncpa [#allocation5], 0
    %11 = vsyncpa [#allocation3], 0
    %12 = vsyncpa [#allocation4], 0
    %13 = vsyncpa [#allocation10], 0
    %14 = vsyncpa [#allocation6], 0
    // Predicated region
    $region2: #{tpu_custom_call.1} parent=1 // pred_check
      _
    $region3: #{tpu_custom_call.1} parent=1 // pred_check_branch
      %16 = sbr.rel (0) target = $region5
    $region4: #{tpu_custom_call.1} parent=1 // pred_region
      %s18 = ssub.s32 16, 16
      %19 = vsyncadd [#allocation5], %s18
      %22 = dma.hbm_to_smem %s0, 16, [#allocation2], [#allocation5]
    $region5: #{tpu_custom_call.1} parent=1 // pred_fallthru
      _
    // Predicated region
    $region6: #{tpu_custom_call.1} parent=1 // pred_check
      _
    $region7: #{tpu_custom_call.1} parent=1 // pred_check_branch
      %24 = sbr.rel (0) target = $region9
    $region8: #{tpu_custom_call.1} parent=1 // pred_region
      %s26 = ssub.s32 256, 256
      %27 = vsyncadd [#allocation3], %s26
      %s28 = sshll.u32 [#allocation7], 4
      %s29 = int_to_ptr.vmem [resolvable:$true] %s28
      %34 = dma.hbm_to_vmem [thread:$0]  %s1, 256, %s29, [#allocation3], 128, 128, 8
    $region9: #{tpu_custom_call.1} parent=1 // pred_fallthru
      _
    // Predicated region
    $region10: #{tpu_custom_call.1} parent=1 // pred_check
      _
    $region11: #{tpu_custom_call.1} parent=1 // pred_check_branch
      %36 = sbr.rel (0) target = $region13
    $region12: #{tpu_custom_call.1} parent=1 // pred_region
      %37 = dma.done [#allocation5], 16
    $region13: #{tpu_custom_call.1} parent=1 // pred_fallthru
      _
    // Predicated region
    $region14: #{tpu_custom_call.1} parent=1 // pred_check
      _
    $region15: #{tpu_custom_call.1} parent=1 // pred_check_branch
      %39 = sbr.rel (0) target = $region17
    $region16: #{tpu_custom_call.1} parent=1 // pred_region
      %40 = dma.done [#allocation3], 256
    $region17: #{tpu_custom_call.1} parent=1 // pred_fallthru
      _
    %41 = sfence
    %s42 = sld [smem:[#allocation2]]
    %s43 = sld [smem:[#allocation2 + $0x1]]
    %s44 = sld [smem:[#allocation2 + $0x2]]
    %s45 = sld [smem:[#allocation2 + $0x5]]
    %s46 = sld [smem:[#allocation2 + $0x6]]
    %s47 = sld [smem:[#allocation2 + $0x7]]
    %s48 = sld [smem:[#allocation2 + $0x8]]
    %s49 = sld [smem:[#allocation2 + $0x9]]
    %s50 = sld [smem:[#allocation2 + $0xa]]
    %v51 = vld [vmem:[#allocation7] sm:$0xff]
    %s52 = scalar_lea.vmem [#allocation7], 8
    %v53 = vld [vmem:[%s52] sm:$0xff]
    %vm54 = vcmask 64512
    %v56 = vsel %vm54, %v51, 0
    %58 = vmatprep.subr.mxu0 0.0
    %59 = vmatpush1.xpose.msra.mxu0 %v56
    %60 = vmatprep.subr.mxu0 0.0
    %61 = vmatpush1.xpose.msra.mxu0 0.0
    %62 = vmatprep.subr.mxu0 0.0
    %63 = vmatpush1.xpose.msra.mxu0 0.0
    %64 = vmatprep.subr.mxu0 0.0
    %65 = vmatpush1.xpose.msra.mxu0 0.0
    %66 = vmatprep.subr.mxu0 0.0
    %67 = vmatpush1.xpose.msra.mxu0 0.0
    %68 = vmatprep.subr.mxu0 0.0
    %69 = vmatpush1.xpose.msra.mxu0 0.0
    %70 = vmatprep.subr.mxu0 0.0
    %71 = vmatpush1.xpose.msra.mxu0 0.0
    %72 = vmatprep.subr.mxu0 0.0
    %73 = vmatpush1.xpose.msra.mxu0 0.0
    %74 = vmatprep.subr.mxu0 0.0
    %75 = vmatpush1.xpose.msra.mxu0 0.0
    %76 = vmatprep.subr.mxu0 0.0
    %77 = vmatpush1.xpose.msra.mxu0 0.0
    %78 = vmatprep.subr.mxu0 0.0
    %79 = vmatpush1.xpose.msra.mxu0 0.0
    %80 = vmatprep.subr.mxu0 0.0
    %81 = vmatpush1.xpose.msra.mxu0 0.0
    %82 = vmatprep.subr.mxu0 0.0
    %83 = vmatpush1.xpose.msra.mxu0 0.0
    %84 = vmatprep.subr.mxu0 0.0
    %85 = vmatpush1.xpose.msra.mxu0 0.0
    %86 = vmatprep.subr.mxu0 0.0
    %87 = vmatpush1.xpose.msra.mxu0 0.0
    %88 = vmatprep.subr.mxu0 0.0
    %89 = vmatpush1.xpose.msra.mxu0 0.0
    %90 = vmatprep.subr.mxu0 0.0
    %91 = vmatpush1.xpose.msra.mxu0 0.0
    %92 = vmatprep.subr.mxu0 0.0
    %93 = vmatpush1.xpose.msra.mxu0 0.0
    %94 = vmatprep.subr.mxu0 0.0
    %95 = vmatpush1.xpose.msra.mxu0 0.0
    %96 = vmatprep.subr.mxu0 0.0
    %97 = vmatpush1.xpose.msra.mxu0 0.0
    %98 = vmatprep.subr.mxu0 0.0
    %99 = vmatpush1.xpose.msra.mxu0 0.0
    %100 = vmatprep.subr.mxu0 0.0
    %101 = vmatpush1.xpose.msra.mxu0 0.0
    %102 = vmatprep.subr.mxu0 0.0
    %103 = vmatpush1.xpose.msra.mxu0 0.0
    %104 = vmatprep.subr.mxu0 0.0
    %105 = vmatpush1.xpose.msra.mxu0 0.0
    %106 = vmatprep.subr.mxu0 0.0
    %107 = vmatpush1.xpose.msra.mxu0 0.0
    %108 = vmatprep.subr.mxu0 0.0
    %109 = vmatpush1.xpose.msra.mxu0 0.0
    %110 = vmatprep.subr.mxu0 0.0
    %111 = vmatpush1.xpose.msra.mxu0 0.0
    %112 = vmatprep.subr.mxu0 0.0
    %113 = vmatpush1.xpose.msra.mxu0 0.0
    %114 = vmatprep.subr.mxu0 0.0
    %115 = vmatpush1.xpose.msra.mxu0 0.0
    %116 = vmatprep.subr.mxu0 0.0
    %117 = vmatpush1.xpose.msra.mxu0 0.0
    %118 = vmatprep.subr.mxu0 0.0
    %119 = vmatpush1.xpose.msra.mxu0 0.0
    %120 = vmatprep.subr.mxu0 0.0
    %121 = vmatpush1.xpose.msra.mxu0 0.0
    %122 = vmatprep.mubr.f32.mxu0 0.0
    %123 = vmatmul.mubr.f32.gmra.mrb[0].mxu0 %v56
    %v124 = vpop.f32.mrb[0].mxu0
    %v125 = vadd.f32 0.0, %v124
    %v126 = vpop.f32.mrb[0].mxu0
    %127 = vdwg.mxu0
    %v128 = vstv %s42
    %v129 = vmul.f32 %v128, %v125
    %130 = vst.msk [vmem:[#allocation8] sm:$0xff] %vm54, %v129
    %v132 = vsel %vm54, %v53, 0
    %134 = vmatprep.subr.mxu0 0.0
    %135 = vmatpush1.xpose.msra.mxu0 %v132
    %136 = vmatprep.subr.mxu0 0.0
    %137 = vmatpush1.xpose.msra.mxu0 0.0
    %138 = vmatprep.subr.mxu0 0.0
    %139 = vmatpush1.xpose.msra.mxu0 0.0
    %140 = vmatprep.subr.mxu0 0.0
    %141 = vmatpush1.xpose.msra.mxu0 0.0
    %142 = vmatprep.subr.mxu0 0.0
    %143 = vmatpush1.xpose.msra.mxu0 0.0
    %144 = vmatprep.subr.mxu0 0.0
    %145 = vmatpush1.xpose.msra.mxu0 0.0
    %146 = vmatprep.subr.mxu0 0.0
    %147 = vmatpush1.xpose.msra.mxu0 0.0
    %148 = vmatprep.subr.mxu0 0.0
    %149 = vmatpush1.xpose.msra.mxu0 0.0
    %150 = vmatprep.subr.mxu0 0.0
    %151 = vmatpush1.xpose.msra.mxu0 0.0
    %152 = vmatprep.subr.mxu0 0.0
    %153 = vmatpush1.xpose.msra.mxu0 0.0
    %154 = vmatprep.subr.mxu0 0.0
    %155 = vmatpush1.xpose.msra.mxu0 0.0
    %156 = vmatprep.subr.mxu0 0.0
    %157 = vmatpush1.xpose.msra.mxu0 0.0
    %158 = vmatprep.subr.mxu0 0.0
    %159 = vmatpush1.xpose.msra.mxu0 0.0
    %160 = vmatprep.subr.mxu0 0.0
    %161 = vmatpush1.xpose.msra.mxu0 0.0
    %162 = vmatprep.subr.mxu0 0.0
    %163 = vmatpush1.xpose.msra.mxu0 0.0
    %164 = vmatprep.subr.mxu0 0.0
    %165 = vmatpush1.xpose.msra.mxu0 0.0
    %166 = vmatprep.subr.mxu0 0.0
    %167 = vmatpush1.xpose.msra.mxu0 0.0
    %168 = vmatprep.subr.mxu0 0.0
    %169 = vmatpush1.xpose.msra.mxu0 0.0
    %170 = vmatprep.subr.mxu0 0.0
    %171 = vmatpush1.xpose.msra.mxu0 0.0
    %172 = vmatprep.subr.mxu0 0.0
    %173 = vmatpush1.xpose.msra.mxu0 0.0
    %174 = vmatprep.subr.mxu0 0.0
    %175 = vmatpush1.xpose.msra.mxu0 0.0
    %176 = vmatprep.subr.mxu0 0.0
    %177 = vmatpush1.xpose.msra.mxu0 0.0
    %178 = vmatprep.subr.mxu0 0.0
    %179 = vmatpush1.xpose.msra.mxu0 0.0
    %180 = vmatprep.subr.mxu0 0.0
    %181 = vmatpush1.xpose.msra.mxu0 0.0
    %182 = vmatprep.subr.mxu0 0.0
    %183 = vmatpush1.xpose.msra.mxu0 0.0
    %184 = vmatprep.subr.mxu0 0.0
    %185 = vmatpush1.xpose.msra.mxu0 0.0
    %186 = vmatprep.subr.mxu0 0.0
    %187 = vmatpush1.xpose.msra.mxu0 0.0
    %188 = vmatprep.subr.mxu0 0.0
    %189 = vmatpush1.xpose.msra.mxu0 0.0
    %190 = vmatprep.subr.mxu0 0.0
    %191 = vmatpush1.xpose.msra.mxu0 0.0
    %192 = vmatprep.subr.mxu0 0.0
    %193 = vmatpush1.xpose.msra.mxu0 0.0
    %194 = vmatprep.subr.mxu0 0.0
    %195 = vmatpush1.xpose.msra.mxu0 0.0
    %196 = vmatprep.subr.mxu0 0.0
    %197 = vmatpush1.xpose.msra.mxu0 0.0
    %198 = vmatprep.mubr.f32.mxu0 0.0
    %199 = vmatmul.mubr.f32.gmra.mrb[0].mxu0 %v132
    %v200 = vpop.f32.mrb[0].mxu0
    %v201 = vadd.f32 0.0, %v200
    %v202 = vpop.f32.mrb[0].mxu0
    %203 = vdwg.mxu0
    %v204 = vmul.f32 %v128, %v201
    %s205 = scalar_lea.vmem [#allocation8], 8
    %206 = vst.msk [vmem:[%s205] sm:$0xff] %vm54, %v204
    %v207 = vmul.f32 %v51, %v51
    %v208 = vmul.f32 %v53, %v53
    %v209 = vadd.f32 %v207, %v208
    %v210 = vsel %vm54, %v209, 0.0
    %211 = vadd.xlane.f32.xlu0 %v210
    %v212 = vpop.xlane.xlu0 %211
    %v213 = vrot.slane %v212, 4
    %v214 = vadd.f32 %v212, %v213
    %v215 = vrot.slane %v214, 2
    %v216 = vadd.f32 %v214, %v215
    %v217 = vrot.slane %v216, 1
    %v218 = vadd.f32 %v216, %v217
    %s219 = vtos %v218
    %v220 = vstv %s219
    %v221 = vmul.f32 %v128, %v220
    %vm222 = vcmask 0
    %223 = vst.msk [vmem:[#allocation9] sm:$0x1] %vm222, %v221
    %s224 = sadd.f32 %s47, %s48
    %s225 = smul.f32 %s44, %s224
    %s226 = sadd.f32 %s45, %s225
    %s227 = scalar_lea.smem [#allocation11], 0
    %228 = sst [smem:[%s227]] %s226
    %s229 = sadd.f32 %s46, %s225
    %s230 = scalar_lea.smem [#allocation11], 1
    %231 = sst [smem:[%s230]] %s229
    %s232 = smul.f32 %s43, %s49
    %s233 = scalar_lea.smem [#allocation11], 2
    %234 = sst [smem:[%s233]] %s232
    %s235 = smul.f32 %s43, %s50
    %s236 = scalar_lea.smem [#allocation11], 3
    %237 = sst [smem:[%s236]] %s235
    // Predicated region
    $region18: #{tpu_custom_call.1} parent=1 // pred_check
      _
    $region19: #{tpu_custom_call.1} parent=1 // pred_check_branch
      %239 = sbr.rel (0) target = $region21
    $region20: #{tpu_custom_call.1} parent=1 // pred_region
      %s241 = ssub.s32 256, 256
      %242 = vsyncadd [#allocation4], %s241
      %s243 = sshll.u32 [#allocation8], 4
      %s244 = int_to_ptr.vmem [resolvable:$true] %s243
      %249 = dma.vmem_to_hbm [thread:$0]  %s244, 256, %s2, [#allocation4], 128, 128, 8
    $region21: #{tpu_custom_call.1} parent=1 // pred_fallthru
      _
    // Predicated region
    $region22: #{tpu_custom_call.1} parent=1 // pred_check
      _
    $region23: #{tpu_custom_call.1} parent=1 // pred_check_branch
      %251 = sbr.rel (0) target = $region25
    $region24: #{tpu_custom_call.1} parent=1 // pred_region
      %s253 = ssub.s32 16, 16
      %254 = vsyncadd [#allocation10], %s253
      %s256 = sshll.u32 [#allocation9], 4
      %s257 = int_to_ptr.vmem [resolvable:$true] %s256
      %259 = dma.vmem_to_hbm [thread:$0]  %s257, 16, %s3, [#allocation10]
    $region25: #{tpu_custom_call.1} parent=1 // pred_fallthru
      _
    // Predicated region
    $region26: #{tpu_custom_call.1} parent=1 // pred_check
      _
    $region27: #{tpu_custom_call.1} parent=1 // pred_check_branch
      %261 = sbr.rel (0) target = $region29
    $region28: #{tpu_custom_call.1} parent=1 // pred_region
      %s263 = ssub.s32 16, 16
      %264 = vsyncadd [#allocation6], %s263
      %267 = dma.smem_to_hbm [#allocation11], 16, %s4, [#allocation6]
    $region29: #{tpu_custom_call.1} parent=1 // pred_fallthru
      _
    // Predicated region
    $region30: #{tpu_custom_call.1} parent=1 // pred_check
      _
    $region31: #{tpu_custom_call.1} parent=1 // pred_check_branch
      %269 = sbr.rel (0) target = $region33
    $region32: #{tpu_custom_call.1} parent=1 // pred_region
      %270 = dma.done [#allocation4], 256
    $region33: #{tpu_custom_call.1} parent=1 // pred_fallthru
      _
    // Predicated region
    $region34: #{tpu_custom_call.1} parent=1 // pred_check
      _
    $region35: #{tpu_custom_call.1} parent=1 // pred_check_branch
      %272 = sbr.rel (0) target = $region37
    $region36: #{tpu_custom_call.1} parent=1 // pred_region
      %273 = dma.done [#allocation10], 16
    $region37: #{tpu_custom_call.1} parent=1 // pred_fallthru
      _
    // Predicated region
    $region38: #{tpu_custom_call.1} parent=1 // pred_check
      _
    $region39: #{tpu_custom_call.1} parent=1 // pred_check_branch
      %275 = sbr.rel (0) target = $region41
    $region40: #{tpu_custom_call.1} parent=1 // pred_region
      %276 = dma.done [#allocation6], 16
    $region41: #{tpu_custom_call.1} parent=1 // pred_fallthru
      _
    %277 = sfence
    %278 = vsyncpa [#allocation3], 1
    %279 = vsyncpa [#allocation4], 1
    %280 = vsyncpa [#allocation10], 1
    %281 = vsyncpa [#allocation5], 1
    %282 = vsyncpa [#allocation6], 1

</llo_original>
